<compile_context>
chip_gen: v5e
topology: v5e:2x2
jax: 0.10.0
libtpu: 0.0.40
codegen_flags: <defaults>
</compile_context>

<pallas_src>
import functools
import math

import jax
import jax.numpy as jnp
from jax.experimental import pallas as pl
from jax.experimental.pallas import tpu as pltpu


def temp_embedder_kernel(x_ref, w1_ref, b1_ref, w2_ref, b2_ref,
                         wex_ref, bex_ref, wey_ref, bey_ref,
                         wu_ref, bu_ref, wfr_ref,
                         wred_ref, bfr_ref,
                         o_ref, *, bt, n):
    # x_ref: (bt*n, D_in) -- batch tile flattened into the matmul M dimension.
    x = x_ref[...]

    # fc1 + exact GELU (nn.GELU default = erf form)
    h = jnp.dot(x, w1_ref[...], preferred_element_type=jnp.float32) + b1_ref[...]
    h = 0.5 * h * (1.0 + jax.lax.erf(h * (1.0 / math.sqrt(2.0))))

    # fc2
    u = jnp.dot(h, w2_ref[...], preferred_element_type=jnp.float32) + b2_ref[...]   # (bt*n, D)
    d_out = u.shape[-1]

    # ---- FGA self potential: Pairwise(D_out, x_spatial_dim=None) ----
    xe = jnp.dot(u, wex_ref[...], preferred_element_type=jnp.float32) + bex_ref[...]
    ye = jnp.dot(u, wey_ref[...], preferred_element_type=jnp.float32) + bey_ref[...]
    # F.normalize over the channel dim (eps=1e-12)
    xn = xe / jnp.maximum(jnp.sqrt(jnp.sum(xe * xe, axis=-1, keepdims=True)), 1e-12)
    yn = ye / jnp.maximum(jnp.sqrt(jnp.sum(ye * ye, axis=-1, keepdims=True)), 1e-12)
    # mean_m(xn_p . yn_m) == xn_p . mean_m(yn_m): exact reduction, removes the NxN matmul.
    xn3 = xn.reshape(bt, n, d_out)
    yn3 = yn.reshape(bt, n, d_out)
    ym = jnp.mean(yn3, axis=1, keepdims=True)                       # (bt, 1, D)
    self_pot = jnp.sum(xn3 * ym, axis=-1)                           # (bt, n)  lane-major

    # ---- FGA unary potential ----
    # TODO(synk): Unary.forward applies F.dropout with training=True default (stochastic);
    #             implemented as identity (eval semantics).
    ue = jnp.maximum(
        jnp.dot(u, wu_ref[...], preferred_element_type=jnp.float32) + bu_ref[...], 0.0)
    ue3 = ue.reshape(bt, n, d_out)
    # feature_reduce (D_out -> 1) as a VPU multiply + lane reduction instead of a (.,D)x(D,1) MXU op.
    un_pot = jnp.sum(ue3 * wfr_ref[...], axis=-1) + bfr_ref[0, 0]   # (bt, n)

    # ---- reduce potentials (Conv1d(2,1,1,bias=False)) + softmax over positions ----
    pot = wred_ref[0, 0] * self_pot + wred_ref[0, 1] * un_pot       # (bt, n)
    pot = pot - jnp.max(pot, axis=-1, keepdims=True)
    e = jnp.exp(pot)
    attn = e * pl.reciprocal(jnp.sum(e, axis=-1, keepdims=True))    # (bt, n)

    # attended output: sum_n attn[b,n] * u[b,n,:]  (VPU multiply + reduce, no MXU)
    u3 = u.reshape(bt, n, d_out)
    o_ref[...] = jnp.sum(attn[:, :, None] * u3, axis=1)             # (bt, D)


def temp_embedder(x, params, *, batch_tile=None):
    B, N, D_in = x.shape
    D_out = params["w2"].shape[1]

    # Pick a batch tile so the matmul M dimension (bt*N rows) is MXU-sized.
    if batch_tile is None:
        batch_tile = max(1, min(B, pl.cdiv(256, N)))
    bt = batch_tile
    b_pad = pl.cdiv(B, bt) * bt
    if b_pad != B:
        x = jnp.pad(x, ((0, b_pad - B), (0, 0), (0, 0)))

    # Flatten (batch, seq) into matmul rows; channels stay on the lane axis.
    x_flat = x.reshape(b_pad * N, D_in)

    # feature_reduce weight as a (1, D_out) row for the in-kernel VPU reduction.
    wfr_row = params["wfr"].reshape(1, D_out)

    def vmem_full(shape):
        return pl.BlockSpec(shape, lambda b, _s=shape: (0,) * len(_s))

    smem_spec = pl.BlockSpec(memory_space=pltpu.MemorySpace.SMEM)

    vmem_args = [params["w1"], params["b1"], params["w2"], params["b2"],
                 params["wex"], params["bex"], params["wey"], params["bey"],
                 params["wu"], params["bu"], wfr_row]
    vmem_specs = [vmem_full(a.shape) for a in vmem_args]

    kernel = functools.partial(temp_embedder_kernel, bt=bt, n=N)

    out = pl.pallas_call(
        kernel,
        out_shape=jax.ShapeDtypeStruct((b_pad, D_out), jnp.float32),
        grid_spec=pltpu.PrefetchScalarGridSpec(
            num_scalar_prefetch=0,
            grid=(b_pad // bt,),
            in_specs=[pl.BlockSpec((bt * N, D_in), lambda b: (b, 0))]
                     + vmem_specs
                     + [smem_spec, smem_spec],
            out_specs=pl.BlockSpec((bt, D_out), lambda b: (b, 0)),
        ),
        compiler_params=pltpu.CompilerParams(
            dimension_semantics=("parallel",)),
    )(x_flat, *vmem_args, params["wred"], params["bfr"])
    return out[:B]                                                   # (B, D_out)


def reference_forward(x, p):
    """Pure-JAX mirror of the PyTorch forward (eval mode)."""
    h = x @ p["w1"] + p["b1"]
    h = 0.5 * h * (1.0 + jax.lax.erf(h / jnp.sqrt(2.0)))
    u = h @ p["w2"] + p["b2"]                                        # (B, N, D_out)

    xe = u @ p["wex"] + p["bex"]
    ye = u @ p["wey"] + p["bey"]
    xn = xe / jnp.maximum(jnp.linalg.norm(xe, axis=-1, keepdims=True), 1e-12)
    yn = ye / jnp.maximum(jnp.linalg.norm(ye, axis=-1, keepdims=True), 1e-12)
    s = jnp.einsum("bnd,bmd->bnm", xn, yn)
    self_pot = s.mean(-1)                                            # (B, N)

    ue = jax.nn.relu(u @ p["wu"] + p["bu"])
    un_pot = (ue @ p["wfr"])[..., 0] + p["bfr"][0, 0]                # (B, N)

    pot = p["wred"][0, 0] * self_pot + p["wred"][0, 1] * un_pot
    attn = jax.nn.softmax(pot, axis=-1)                              # (B, N)
    return jnp.einsum("bnd,bn->bd", u, attn)                         # (B, D_out)


def make_params(key, d_in, hidden, d_out):
    ks = jax.random.split(key, 16)
    sc = 0.05
    p = {
        "w1":  sc * jax.random.normal(ks[0], (d_in, hidden), jnp.float32),
        "b1":  sc * jax.random.normal(ks[1], (1, hidden), jnp.float32),
        "w2":  sc * jax.random.normal(ks[2], (hidden, d_out), jnp.float32),
        "b2":  sc * jax.random.normal(ks[3], (1, d_out), jnp.float32),
        # Pairwise (self potential): embed_X / embed_Y 1x1 convs
        "wex": sc * jax.random.normal(ks[4], (d_out, d_out), jnp.float32),
        "bex": sc * jax.random.normal(ks[5], (1, d_out), jnp.float32),
        "wey": sc * jax.random.normal(ks[6], (d_out, d_out), jnp.float32),
        "bey": sc * jax.random.normal(ks[7], (1, d_out), jnp.float32),
        # Unary: embed + feature_reduce 1x1 convs
        "wu":  sc * jax.random.normal(ks[8], (d_out, d_out), jnp.float32),
        "bu":  sc * jax.random.normal(ks[9], (1, d_out), jnp.float32),
        "wfr": sc * jax.random.normal(ks[10], (d_out, 1), jnp.float32),
        "bfr": sc * jax.random.normal(ks[11], (1, 1), jnp.float32),
        # reduce_potentials: Conv1d(2, 1, 1, bias=False) -> [w_self, w_unary]
        "wred": sc * jax.random.normal(ks[12], (1, 2), jnp.float32),
    }
    return p


if __name__ == "__main__":
    # small shapes consistent with the module: input_size=32, hidden=64, output=128
    B, N, D_IN, HIDDEN, D_OUT = 2, 8, 32, 64, 128

    key = jax.random.PRNGKey(0)
    kx, kp = jax.random.split(key)
    x = jax.random.normal(kx, (B, N, D_IN), jnp.float32)
    params = make_params(kp, D_IN, HIDDEN, D_OUT)

    out = temp_embedder(x, params)
    out = jax.block_until_ready(out)

    ref = reference_forward(x, params)
    assert out.shape == (B, D_OUT)
    assert jnp.allclose(out, ref, rtol=1e-4, atol=1e-4), "mismatch vs reference"

    print("KERNEL_OK")
</pallas_src>

<mosaic_0001>
module attributes {stable_mosaic.version = 11 : i64} {
  func.func @temp_embedder_kernel(%arg0: i32, %arg1: memref<16x32xf32, #tpu.memory_space<vmem>>, %arg2: memref<32x64xf32, #tpu.memory_space<vmem>>, %arg3: memref<1x64xf32, #tpu.memory_space<vmem>>, %arg4: memref<64x128xf32, #tpu.memory_space<vmem>>, %arg5: memref<1x128xf32, #tpu.memory_space<vmem>>, %arg6: memref<128x128xf32, #tpu.memory_space<vmem>>, %arg7: memref<1x128xf32, #tpu.memory_space<vmem>>, %arg8: memref<128x128xf32, #tpu.memory_space<vmem>>, %arg9: memref<1x128xf32, #tpu.memory_space<vmem>>, %arg10: memref<128x128xf32, #tpu.memory_space<vmem>>, %arg11: memref<1x128xf32, #tpu.memory_space<vmem>>, %arg12: memref<1x128xf32, #tpu.memory_space<vmem>>, %arg13: memref<1x2xf32, #tpu.memory_space<smem>>, %arg14: memref<1x1xf32, #tpu.memory_space<smem>>, %arg15: memref<2x128xf32, #tpu.memory_space<vmem>>) attributes {dimension_semantics = [#tpu.dimension_semantics<parallel>], iteration_bounds = array<i64: 1>, scalar_prefetch = 0 : i64, scratch_operands = 0 : i64, tpu.core_type = #tpu.core_type<tc>, window_params = [{transform_indices = @transform_0, window_bounds = array<i64: 16, 32>}, {pipeline_mode = #tpu.pipeline_mode<synchronous>, transform_indices = @transform_1, window_bounds = array<i64: 32, 64>}, {pipeline_mode = #tpu.pipeline_mode<synchronous>, transform_indices = @transform_2, window_bounds = array<i64: 1, 64>}, {pipeline_mode = #tpu.pipeline_mode<synchronous>, transform_indices = @transform_3, window_bounds = array<i64: 64, 128>}, {pipeline_mode = #tpu.pipeline_mode<synchronous>, transform_indices = @transform_4, window_bounds = array<i64: 1, 128>}, {pipeline_mode = #tpu.pipeline_mode<synchronous>, transform_indices = @transform_5, window_bounds = array<i64: 128, 128>}, {pipeline_mode = #tpu.pipeline_mode<synchronous>, transform_indices = @transform_6, window_bounds = array<i64: 1, 128>}, {pipeline_mode = #tpu.pipeline_mode<synchronous>, transform_indices = @transform_7, window_bounds = array<i64: 128, 128>}, {pipeline_mode = #tpu.pipeline_mode<synchronous>, transform_indices = @transform_8, window_bounds = array<i64: 1, 128>}, {pipeline_mode = #tpu.pipeline_mode<synchronous>, transform_indices = @transform_9, window_bounds = array<i64: 128, 128>}, {pipeline_mode = #tpu.pipeline_mode<synchronous>, transform_indices = @transform_10, window_bounds = array<i64: 1, 128>}, {pipeline_mode = #tpu.pipeline_mode<synchronous>, transform_indices = @transform_11, window_bounds = array<i64: 1, 128>}, {transform_indices = @transform_12, window_bounds = array<i64: 1, 2>}, {transform_indices = @transform_13, window_bounds = array<i64: 1, 1>}, {transform_indices = @transform_14, window_bounds = array<i64: 2, 128>}]} {
    %c0 = arith.constant 0 : index
    %c0_0 = arith.constant 0 : index
    %0 = vector.load %arg1[%c0, %c0_0] : memref<16x32xf32, #tpu.memory_space<vmem>>, vector<16x32xf32>
    %c0_1 = arith.constant 0 : index
    %c0_2 = arith.constant 0 : index
    %1 = vector.load %arg2[%c0_1, %c0_2] : memref<32x64xf32, #tpu.memory_space<vmem>>, vector<32x64xf32>
    %cst = arith.constant dense<0.000000e+00> : vector<16x64xf32>
    %2 = tpu.matmul %0, %1, %cst {dimension_numbers = #tpu.dot_dimension_numbers<[1], [0], [0], [1], [0, 0, 1, 1], [], []>} : vector<16x32xf32>, vector<32x64xf32>, vector<16x64xf32> -> vector<16x64xf32>
    %c0_3 = arith.constant 0 : index
    %c0_4 = arith.constant 0 : index
    %3 = vector.load %arg3[%c0_3, %c0_4] : memref<1x64xf32, #tpu.memory_space<vmem>>, vector<1x64xf32>
    %4 = vector.broadcast %3 : vector<1x64xf32> to vector<16x64xf32>
    %5 = arith.addf %2, %4 : vector<16x64xf32>
    %cst_5 = arith.constant 5.000000e-01 : f32
    %6 = vector.broadcast %cst_5 : f32 to vector<16x64xf32>
    %7 = arith.mulf %6, %5 : vector<16x64xf32>
    %cst_6 = arith.constant 0.707106769 : f32
    %8 = vector.broadcast %cst_6 : f32 to vector<16x64xf32>
    %9 = arith.mulf %5, %8 : vector<16x64xf32>
    %10 = math.erf %9 : vector<16x64xf32>
    %cst_7 = arith.constant 1.000000e+00 : f32
    %11 = vector.broadcast %cst_7 : f32 to vector<16x64xf32>
    %12 = arith.addf %11, %10 : vector<16x64xf32>
    %13 = arith.mulf %7, %12 : vector<16x64xf32>
    %c0_8 = arith.constant 0 : index
    %c0_9 = arith.constant 0 : index
    %14 = vector.load %arg4[%c0_8, %c0_9] : memref<64x128xf32, #tpu.memory_space<vmem>>, vector<64x128xf32>
    %cst_10 = arith.constant dense<0.000000e+00> : vector<16x128xf32>
    %15 = tpu.matmul %13, %14, %cst_10 {dimension_numbers = #tpu.dot_dimension_numbers<[1], [0], [0], [1], [0, 0, 1, 1], [], []>} : vector<16x64xf32>, vector<64x128xf32>, vector<16x128xf32> -> vector<16x128xf32>
    %c0_11 = arith.constant 0 : index
    %c0_12 = arith.constant 0 : index
    %16 = vector.load %arg5[%c0_11, %c0_12] : memref<1x128xf32, #tpu.memory_space<vmem>>, vector<1x128xf32>
    %17 = vector.broadcast %16 : vector<1x128xf32> to vector<16x128xf32>
    %18 = arith.addf %15, %17 : vector<16x128xf32>
    %c0_13 = arith.constant 0 : index
    %c0_14 = arith.constant 0 : index
    %19 = vector.load %arg6[%c0_13, %c0_14] : memref<128x128xf32, #tpu.memory_space<vmem>>, vector<128x128xf32>
    %cst_15 = arith.constant dense<0.000000e+00> : vector<16x128xf32>
    %20 = tpu.matmul %18, %19, %cst_15 {dimension_numbers = #tpu.dot_dimension_numbers<[1], [0], [0], [1], [0, 0, 1, 1], [], []>} : vector<16x128xf32>, vector<128x128xf32>, vector<16x128xf32> -> vector<16x128xf32>
    %c0_16 = arith.constant 0 : index
    %c0_17 = arith.constant 0 : index
    %21 = vector.load %arg7[%c0_16, %c0_17] : memref<1x128xf32, #tpu.memory_space<vmem>>, vector<1x128xf32>
    %22 = vector.broadcast %21 : vector<1x128xf32> to vector<16x128xf32>
    %23 = arith.addf %20, %22 : vector<16x128xf32>
    %c0_18 = arith.constant 0 : index
    %c0_19 = arith.constant 0 : index
    %24 = vector.load %arg8[%c0_18, %c0_19] : memref<128x128xf32, #tpu.memory_space<vmem>>, vector<128x128xf32>
    %cst_20 = arith.constant dense<0.000000e+00> : vector<16x128xf32>
    %25 = tpu.matmul %18, %24, %cst_20 {dimension_numbers = #tpu.dot_dimension_numbers<[1], [0], [0], [1], [0, 0, 1, 1], [], []>} : vector<16x128xf32>, vector<128x128xf32>, vector<16x128xf32> -> vector<16x128xf32>
    %c0_21 = arith.constant 0 : index
    %c0_22 = arith.constant 0 : index
    %26 = vector.load %arg9[%c0_21, %c0_22] : memref<1x128xf32, #tpu.memory_space<vmem>>, vector<1x128xf32>
    %27 = vector.broadcast %26 : vector<1x128xf32> to vector<16x128xf32>
    %28 = arith.addf %25, %27 : vector<16x128xf32>
    %29 = arith.mulf %23, %23 : vector<16x128xf32>
    %cst_23 = arith.constant dense<0.000000e+00> : vector<16xf32>
    %30 = vector.multi_reduction <add>, %29, %cst_23 [1] : vector<16x128xf32> to vector<16xf32>
    %31 = vector.shape_cast %30 : vector<16xf32> to vector<16x1xf32>
    %32 = math.sqrt %31 : vector<16x1xf32>
    %cst_24 = arith.constant 9.99999996E-13 : f32
    %33 = vector.broadcast %cst_24 : f32 to vector<16x1xf32>
    %34 = arith.maximumf %32, %33 : vector<16x1xf32>
    %35 = vector.broadcast %34 : vector<16x1xf32> to vector<16x128xf32>
    %36 = arith.divf %23, %35 : vector<16x128xf32>
    %37 = arith.mulf %28, %28 : vector<16x128xf32>
    %cst_25 = arith.constant dense<0.000000e+00> : vector<16xf32>
    %38 = vector.multi_reduction <add>, %37, %cst_25 [1] : vector<16x128xf32> to vector<16xf32>
    %39 = vector.shape_cast %38 : vector<16xf32> to vector<16x1xf32>
    %40 = math.sqrt %39 : vector<16x1xf32>
    %cst_26 = arith.constant 9.99999996E-13 : f32
    %41 = vector.broadcast %cst_26 : f32 to vector<16x1xf32>
    %42 = arith.maximumf %40, %41 : vector<16x1xf32>
    %43 = vector.broadcast %42 : vector<16x1xf32> to vector<16x128xf32>
    %44 = arith.divf %28, %43 : vector<16x128xf32>
    %45 = vector.shape_cast %36 : vector<16x128xf32> to vector<2x8x128xf32>
    %46 = vector.shape_cast %44 : vector<16x128xf32> to vector<2x8x128xf32>
    %cst_27 = arith.constant dense<0.000000e+00> : vector<2x128xf32>
    %47 = vector.multi_reduction <add>, %46, %cst_27 [1] : vector<2x8x128xf32> to vector<2x128xf32>
    %48 = vector.shape_cast %47 : vector<2x128xf32> to vector<2x1x128xf32>
    %cst_28 = arith.constant 8.000000e+00 : f32
    %49 = vector.broadcast %cst_28 : f32 to vector<2x1x128xf32>
    %50 = arith.divf %48, %49 : vector<2x1x128xf32>
    %51 = vector.broadcast %50 : vector<2x1x128xf32> to vector<2x8x128xf32>
    %52 = arith.mulf %45, %51 : vector<2x8x128xf32>
    %cst_29 = arith.constant dense<0.000000e+00> : vector<2x8xf32>
    %53 = vector.multi_reduction <add>, %52, %cst_29 [2] : vector<2x8x128xf32> to vector<2x8xf32>
    %c0_30 = arith.constant 0 : index
    %c0_31 = arith.constant 0 : index
    %54 = vector.load %arg10[%c0_30, %c0_31] : memref<128x128xf32, #tpu.memory_space<vmem>>, vector<128x128xf32>
    %cst_32 = arith.constant dense<0.000000e+00> : vector<16x128xf32>
    %55 = tpu.matmul %18, %54, %cst_32 {dimension_numbers = #tpu.dot_dimension_numbers<[1], [0], [0], [1], [0, 0, 1, 1], [], []>} : vector<16x128xf32>, vector<128x128xf32>, vector<16x128xf32> -> vector<16x128xf32>
    %c0_33 = arith.constant 0 : index
    %c0_34 = arith.constant 0 : index
    %56 = vector.load %arg11[%c0_33, %c0_34] : memref<1x128xf32, #tpu.memory_space<vmem>>, vector<1x128xf32>
    %57 = vector.broadcast %56 : vector<1x128xf32> to vector<16x128xf32>
    %58 = arith.addf %55, %57 : vector<16x128xf32>
    %cst_35 = arith.constant 0.000000e+00 : f32
    %59 = vector.broadcast %cst_35 : f32 to vector<16x128xf32>
    %60 = arith.maximumf %58, %59 : vector<16x128xf32>
    %61 = vector.shape_cast %60 : vector<16x128xf32> to vector<2x8x128xf32>
    %c0_36 = arith.constant 0 : index
    %c0_37 = arith.constant 0 : index
    %62 = vector.load %arg12[%c0_36, %c0_37] : memref<1x128xf32, #tpu.memory_space<vmem>>, vector<1x128xf32>
    %63 = vector.shape_cast %62 : vector<1x128xf32> to vector<1x1x128xf32>
    %64 = vector.broadcast %63 : vector<1x1x128xf32> to vector<2x8x128xf32>
    %65 = arith.mulf %61, %64 : vector<2x8x128xf32>
    %cst_38 = arith.constant dense<0.000000e+00> : vector<2x8xf32>
    %66 = vector.multi_reduction <add>, %65, %cst_38 [2] : vector<2x8x128xf32> to vector<2x8xf32>
    %c0_39 = arith.constant 0 : index
    %c0_40 = arith.constant 0 : index
    %67 = memref.load %arg14[%c0_39, %c0_40] : memref<1x1xf32, #tpu.memory_space<smem>>
    %68 = vector.broadcast %67 : f32 to vector<2x8xf32>
    %69 = arith.addf %66, %68 : vector<2x8xf32>
    %c0_41 = arith.constant 0 : index
    %c0_42 = arith.constant 0 : index
    %70 = memref.load %arg13[%c0_41, %c0_42] : memref<1x2xf32, #tpu.memory_space<smem>>
    %71 = vector.broadcast %70 : f32 to vector<2x8xf32>
    %72 = arith.mulf %71, %53 : vector<2x8xf32>
    %c0_43 = arith.constant 0 : index
    %c1 = arith.constant 1 : index
    %73 = memref.load %arg13[%c0_43, %c1] : memref<1x2xf32, #tpu.memory_space<smem>>
    %74 = vector.broadcast %73 : f32 to vector<2x8xf32>
    %75 = arith.mulf %74, %69 : vector<2x8xf32>
    %76 = arith.addf %72, %75 : vector<2x8xf32>
    %cst_44 = arith.constant dense<0xFF800000> : vector<2xf32>
    %77 = vector.multi_reduction <maximumf>, %76, %cst_44 [1] : vector<2x8xf32> to vector<2xf32>
    %78 = vector.shape_cast %77 : vector<2xf32> to vector<2x1xf32>
    %79 = vector.broadcast %78 : vector<2x1xf32> to vector<2x8xf32>
    %80 = arith.subf %76, %79 : vector<2x8xf32>
    %81 = math.exp %80 : vector<2x8xf32>
    %cst_45 = arith.constant dense<0.000000e+00> : vector<2xf32>
    %82 = vector.multi_reduction <add>, %81, %cst_45 [1] : vector<2x8xf32> to vector<2xf32>
    %83 = vector.shape_cast %82 : vector<2xf32> to vector<2x1xf32>
    %84 = tpu.reciprocal %83 : vector<2x1xf32> -> vector<2x1xf32>
    %85 = vector.broadcast %84 : vector<2x1xf32> to vector<2x8xf32>
    %86 = arith.mulf %81, %85 : vector<2x8xf32>
    %87 = vector.shape_cast %18 : vector<16x128xf32> to vector<2x8x128xf32>
    %88 = vector.shape_cast %86 : vector<2x8xf32> to vector<2x8x1xf32>
    %89 = vector.broadcast %88 : vector<2x8x1xf32> to vector<2x8x128xf32>
    %90 = arith.mulf %89, %87 : vector<2x8x128xf32>
    %cst_46 = arith.constant dense<0.000000e+00> : vector<2x128xf32>
    %91 = vector.multi_reduction <add>, %90, %cst_46 [1] : vector<2x8x128xf32> to vector<2x128xf32>
    %c0_47 = arith.constant 0 : index
    %c0_48 = arith.constant 0 : index
    %92 = vector.load %arg15[%c0_47, %c0_48] : memref<2x128xf32, #tpu.memory_space<vmem>>, vector<2x128xf32>
    tpu.vector_store %arg15[%c0_47, %c0_48], %91 {strides = array<i32>} : memref<2x128xf32, #tpu.memory_space<vmem>>, vector<2x128xf32>,
    return
  }
  func.func @transform_0(%arg0: i32) -> (i32, i32) {
    %c0_i32 = arith.constant 0 : i32
    %c0_i32_0 = arith.constant 0 : i32
    return %arg0, %c0_i32 : i32, i32
  }
  func.func @transform_1(%arg0: i32) -> (i32, i32) {
    %c0_i32 = arith.constant 0 : i32
    %c0_i32_0 = arith.constant 0 : i32
    %c0_i32_1 = arith.constant 0 : i32
    return %c0_i32, %c0_i32_0 : i32, i32
  }
  func.func @transform_2(%arg0: i32) -> (i32, i32) {
    %c0_i32 = arith.constant 0 : i32
    %c0_i32_0 = arith.constant 0 : i32
    %c0_i32_1 = arith.constant 0 : i32
    return %c0_i32, %c0_i32_0 : i32, i32
  }
  func.func @transform_3(%arg0: i32) -> (i32, i32) {
    %c0_i32 = arith.constant 0 : i32
    %c0_i32_0 = arith.constant 0 : i32
    %c0_i32_1 = arith.constant 0 : i32
    return %c0_i32, %c0_i32_0 : i32, i32
  }
  func.func @transform_4(%arg0: i32) -> (i32, i32) {
    %c0_i32 = arith.constant 0 : i32
    %c0_i32_0 = arith.constant 0 : i32
    %c0_i32_1 = arith.constant 0 : i32
    return %c0_i32, %c0_i32_0 : i32, i32
  }
  func.func @transform_5(%arg0: i32) -> (i32, i32) {
    %c0_i32 = arith.constant 0 : i32
    %c0_i32_0 = arith.constant 0 : i32
    %c0_i32_1 = arith.constant 0 : i32
    return %c0_i32, %c0_i32_0 : i32, i32
  }
  func.func @transform_6(%arg0: i32) -> (i32, i32) {
    %c0_i32 = arith.constant 0 : i32
    %c0_i32_0 = arith.constant 0 : i32
    %c0_i32_1 = arith.constant 0 : i32
    return %c0_i32, %c0_i32_0 : i32, i32
  }
  func.func @transform_7(%arg0: i32) -> (i32, i32) {
    %c0_i32 = arith.constant 0 : i32
    %c0_i32_0 = arith.constant 0 : i32
    %c0_i32_1 = arith.constant 0 : i32
    return %c0_i32, %c0_i32_0 : i32, i32
  }
  func.func @transform_8(%arg0: i32) -> (i32, i32) {
    %c0_i32 = arith.constant 0 : i32
    %c0_i32_0 = arith.constant 0 : i32
    %c0_i32_1 = arith.constant 0 : i32
    return %c0_i32, %c0_i32_0 : i32, i32
  }
  func.func @transform_9(%arg0: i32) -> (i32, i32) {
    %c0_i32 = arith.constant 0 : i32
    %c0_i32_0 = arith.constant 0 : i32
    %c0_i32_1 = arith.constant 0 : i32
    return %c0_i32, %c0_i32_0 : i32, i32
  }
  func.func @transform_10(%arg0: i32) -> (i32, i32) {
    %c0_i32 = arith.constant 0 : i32
    %c0_i32_0 = arith.constant 0 : i32
    %c0_i32_1 = arith.constant 0 : i32
    return %c0_i32, %c0_i32_0 : i32, i32
  }
  func.func @transform_11(%arg0: i32) -> (i32, i32) {
    %c0_i32 = arith.constant 0 : i32
    %c0_i32_0 = arith.constant 0 : i32
    %c0_i32_1 = arith.constant 0 : i32
    return %c0_i32, %c0_i32_0 : i32, i32
  }
  func.func @transform_12(%arg0: i32) -> (i32, i32) {
    %c0_i32 = arith.constant 0 : i32
    %c0_i32_0 = arith.constant 0 : i32
    %c0_i32_1 = arith.constant 0 : i32
    return %c0_i32, %c0_i32_0 : i32, i32
  }
  func.func @transform_13(%arg0: i32) -> (i32, i32) {
    %c0_i32 = arith.constant 0 : i32
    %c0_i32_0 = arith.constant 0 : i32
    %c0_i32_1 = arith.constant 0 : i32
    return %c0_i32, %c0_i32_0 : i32, i32
  }
  func.func @transform_14(%arg0: i32) -> (i32, i32) {
    %c0_i32 = arith.constant 0 : i32
    %c0_i32_0 = arith.constant 0 : i32
    return %arg0, %c0_i32 : i32, i32
  }
}

</mosaic_0001>

<llo_original>
// kernel: tpu_custom_call.1
$region0: #{tpu_custom_call.1}
  #allocation0 [shape = 'u32[]', space=smem, size = 0x4, offset = 0x4, fixed_abs, tag = 'smem constant byte address 0x4 - core index']
  #allocation1 [shape = 'u32[72,128]{1,0:T(1,128)}', space=vmem, size = 0x9000, scoped, tag = 'internal scratch']
  #allocation2 [shape = 'f32[1,1]{1,0:T(1,128)S(6)}', space=smem, size = 0x200, scoped, tag = 'scoped memory for tpu_custom_call.1']
  %s0 = inlined_call_operand.hbm [shape: f32[16,32], index: 0, kind: input, shape index: {}]
  %s1 = inlined_call_operand.hbm [shape: f32[32,64], index: 1, kind: input, shape index: {}]
  %s2 = inlined_call_operand.vmem [shape: f32[1,64], index: 2, kind: input, shape index: {}]
  %s3 = inlined_call_operand.hbm [shape: f32[64,128], index: 3, kind: input, shape index: {}]
  %s4 = inlined_call_operand.vmem [shape: f32[1,128], index: 4, kind: input, shape index: {}]
  %s5 = inlined_call_operand.hbm [shape: f32[128,128], index: 5, kind: input, shape index: {}]
  %s6 = inlined_call_operand.vmem [shape: f32[1,128], index: 6, kind: input, shape index: {}]
  %s7 = inlined_call_operand.hbm [shape: f32[128,128], index: 7, kind: input, shape index: {}]
  %s8 = inlined_call_operand.vmem [shape: f32[1,128], index: 8, kind: input, shape index: {}]
  %s9 = inlined_call_operand.hbm [shape: f32[128,128], index: 9, kind: input, shape index: {}]
  %s10 = inlined_call_operand.vmem [shape: f32[1,128], index: 10, kind: input, shape index: {}]
  %s11 = inlined_call_operand.vmem [shape: f32[1,128], index: 11, kind: input, shape index: {}]
  %s12 = inlined_call_operand.vmem [shape: f32[1,2], index: 12, kind: input, shape index: {}]
  %s13 = inlined_call_operand.<no memory space> [shape: f32[1,1], index: 13, kind: input, shape index: {}]
  %s14 = inlined_call_operand.hbm [shape: f32[2,128], index: 14, kind: output, shape index: {}]
  %s15 = sld [smem:[#allocation0]]
  $region94: #{tpu_custom_call.1} parent=0
    _
  %s17 = ssub.s32 1, %s15
  %s18 = scalar_select 0, %s17, %s15
  %19 = sst [smem:[#allocation2]] %s13
  $region1: #{tpu_custom_call.1} parent=0
    #allocation3 [shape = 'u8[8192]{0}', space=vmem, size = 0x2000, scoped, tag = 'input window, operand 0, single buffered']
    #allocation4 [shape = 's32[1]{0}', space=sflag, size = 0x4, scoped, tag = 'scoped memory for tpu_custom_call.1']
    #allocation5 [shape = 's32[1]{0}', space=sflag, size = 0x4, scoped, tag = 'scoped memory for tpu_custom_call.1']
    #allocation6 [shape = 's32[1]{0}', space=sflag, size = 0x4, scoped, tag = 'scoped memory for tpu_custom_call.1']
    #allocation7 [shape = 'u8[16384]{0}', space=vmem, size = 0x4000, scoped, tag = 'input window, operand 1, single buffered']
    #allocation8 [shape = 's32[1]{0}', space=sflag, size = 0x4, scoped, tag = 'scoped memory for tpu_custom_call.1']
    #allocation9 [shape = 'u8[32768]{0}', space=vmem, size = 0x8000, scoped, tag = 'input window, operand 3, single buffered']
    #allocation10 [shape = 'u8[65536]{0}', space=vmem, size = 0x10000, scoped, tag = 'input window, operand 5, single buffered']
    #allocation11 [shape = 's32[1]{0}', space=sflag, size = 0x4, scoped, tag = 'scoped memory for tpu_custom_call.1']
    #allocation12 [shape = 'u8[65536]{0}', space=vmem, size = 0x10000, scoped, tag = 'input window, operand 7, single buffered']
    #allocation13 [shape = 'u8[65536]{0}', space=vmem, size = 0x10000, scoped, tag = 'input window, operand 9, single buffered']
    #allocation14 [shape = 's32[1]{0}', space=sflag, size = 0x4, scoped, tag = 'scoped memory for tpu_custom_call.1']
    #allocation15 [shape = 'u8[512]{0}', space=smem, size = 0x200, scoped, tag = 'input window, operand 12, single buffered']
    #allocation16 [shape = 'u8[1024]{0}', space=vmem, size = 0x400, scoped, tag = 'output window, operand 0, single buffered']
    %20 = vsyncpa [#allocation4], 0
    %21 = vsyncpa [#allocation8], 0
    %22 = vsyncpa [#allocation11], 0
    %23 = vsyncpa [#allocation14], 0
    %24 = vsyncpa [#allocation6], 0
    %25 = vsyncpa [#allocation5], 0
    // Predicated region
    $region2: #{tpu_custom_call.1} parent=1 // pred_check
      _
    $region3: #{tpu_custom_call.1} parent=1 // pred_check_branch
      %27 = sbr.rel (0) target = $region5
    $region4: #{tpu_custom_call.1} parent=1 // pred_region
      %29 = vsyncadd [#allocation4], 0
      %s30 = sshll.u32 %s0, 4
      %s31 = int_to_ptr.hbm [resolvable:$true] %s30
      %s32 = sshll.u32 [#allocation3], 4
      %s33 = int_to_ptr.vmem [resolvable:$true] %s32
      %38 = dma.hbm_to_vmem [thread:$0]  %s31, 256, %s33, [#allocation4], 128, 128, 8
    $region5: #{tpu_custom_call.1} parent=1 // pred_fallthru
      _
    // Predicated region
    $region6: #{tpu_custom_call.1} parent=1 // pred_check
      _
    $region7: #{tpu_custom_call.1} parent=1 // pred_check_branch
      %40 = sbr.rel (0) target = $region9
    $region8: #{tpu_custom_call.1} parent=1 // pred_region
      %42 = vsyncadd [#allocation8], 0
      %s43 = sshll.u32 %s1, 4
      %s44 = int_to_ptr.hbm [resolvable:$true] %s43
      %s45 = sshll.u32 [#allocation7], 4
      %s46 = int_to_ptr.vmem [resolvable:$true] %s45
      %51 = dma.hbm_to_vmem [thread:$0]  %s44, 512, %s46, [#allocation8], 128, 128, 8
    $region9: #{tpu_custom_call.1} parent=1 // pred_fallthru
      _
    // Predicated region
    $region10: #{tpu_custom_call.1} parent=1 // pred_check
      _
    $region11: #{tpu_custom_call.1} parent=1 // pred_check_branch
      %53 = sbr.rel (0) target = $region13
    $region12: #{tpu_custom_call.1} parent=1 // pred_region
      _
    $region13: #{tpu_custom_call.1} parent=1 // pred_fallthru
      _
    // Predicated region
    $region14: #{tpu_custom_call.1} parent=1 // pred_check
      _
    $region15: #{tpu_custom_call.1} parent=1 // pred_check_branch
      %55 = sbr.rel (0) target = $region17
    $region16: #{tpu_custom_call.1} parent=1 // pred_region
      %57 = vsyncadd [#allocation8], 0
      %s58 = sshll.u32 %s3, 4
      %s59 = int_to_ptr.hbm [resolvable:$true] %s58
      %s60 = sshll.u32 [#allocation9], 4
      %s61 = int_to_ptr.vmem [resolvable:$true] %s60
      %66 = dma.hbm_to_vmem [thread:$0]  %s59, 1024, %s61, [#allocation8], 128, 128, 8
    $region17: #{tpu_custom_call.1} parent=1 // pred_fallthru
      _
    // Predicated region
    $region18: #{tpu_custom_call.1} parent=1 // pred_check
      _
    $region19: #{tpu_custom_call.1} parent=1 // pred_check_branch
      %68 = sbr.rel (0) target = $region21
    $region20: #{tpu_custom_call.1} parent=1 // pred_region
      _
    $region21: #{tpu_custom_call.1} parent=1 // pred_fallthru
      _
    // Predicated region
    $region22: #{tpu_custom_call.1} parent=1 // pred_check
      _
    $region23: #{tpu_custom_call.1} parent=1 // pred_check_branch
      %70 = sbr.rel (0) target = $region25
    $region24: #{tpu_custom_call.1} parent=1 // pred_region
      %72 = vsyncadd [#allocation11], 0
      %s73 = sshll.u32 %s5, 4
      %s74 = int_to_ptr.hbm [resolvable:$true] %s73
      %s75 = sshll.u32 [#allocation10], 4
      %s76 = int_to_ptr.vmem [resolvable:$true] %s75
      %81 = dma.hbm_to_vmem [thread:$0]  %s74, 2048, %s76, [#allocation11], 128, 128, 8
    $region25: #{tpu_custom_call.1} parent=1 // pred_fallthru
      _
    // Predicated region
    $region26: #{tpu_custom_call.1} parent=1 // pred_check
      _
    $region27: #{tpu_custom_call.1} parent=1 // pred_check_branch
      %83 = sbr.rel (0) target = $region29
    $region28: #{tpu_custom_call.1} parent=1 // pred_region
      _
    $region29: #{tpu_custom_call.1} parent=1 // pred_fallthru
      _
    // Predicated region
    $region30: #{tpu_custom_call.1} parent=1 // pred_check
      _
    $region31: #{tpu_custom_call.1} parent=1 // pred_check_branch
      %85 = sbr.rel (0) target = $region33
    $region32: #{tpu_custom_call.1} parent=1 // pred_region
      %87 = vsyncadd [#allocation11], 0
      %s88 = sshll.u32 %s7, 4
      %s89 = int_to_ptr.hbm [resolvable:$true] %s88
      %s90 = sshll.u32 [#allocation12], 4
      %s91 = int_to_ptr.vmem [resolvable:$true] %s90
      %96 = dma.hbm_to_vmem [thread:$0]  %s89, 2048, %s91, [#allocation11], 128, 128, 8
    $region33: #{tpu_custom_call.1} parent=1 // pred_fallthru
      _
    // Predicated region
    $region34: #{tpu_custom_call.1} parent=1 // pred_check
      _
    $region35: #{tpu_custom_call.1} parent=1 // pred_check_branch
      %98 = sbr.rel (0) target = $region37
    $region36: #{tpu_custom_call.1} parent=1 // pred_region
      _
    $region37: #{tpu_custom_call.1} parent=1 // pred_fallthru
      _
    // Predicated region
    $region38: #{tpu_custom_call.1} parent=1 // pred_check
      _
    $region39: #{tpu_custom_call.1} parent=1 // pred_check_branch
      %100 = sbr.rel (0) target = $region41
    $region40: #{tpu_custom_call.1} parent=1 // pred_region
      %102 = vsyncadd [#allocation14], 0
      %s103 = sshll.u32 %s9, 4
      %s104 = int_to_ptr.hbm [resolvable:$true] %s103
      %s105 = sshll.u32 [#allocation13], 4
      %s106 = int_to_ptr.vmem [resolvable:$true] %s105
      %111 = dma.hbm_to_vmem [thread:$0]  %s104, 2048, %s106, [#allocation14], 128, 128, 8
    $region41: #{tpu_custom_call.1} parent=1 // pred_fallthru
      _
    // Predicated region
    $region42: #{tpu_custom_call.1} parent=1 // pred_check
      _
    $region43: #{tpu_custom_call.1} parent=1 // pred_check_branch
      %113 = sbr.rel (0) target = $region45
    $region44: #{tpu_custom_call.1} parent=1 // pred_region
      _
    $region45: #{tpu_custom_call.1} parent=1 // pred_fallthru
      _
    // Predicated region
    $region46: #{tpu_custom_call.1} parent=1 // pred_check
      _
    $region47: #{tpu_custom_call.1} parent=1 // pred_check_branch
      %115 = sbr.rel (0) target = $region49
    $region48: #{tpu_custom_call.1} parent=1 // pred_region
      _
    $region49: #{tpu_custom_call.1} parent=1 // pred_fallthru
      _
    // Predicated region
    $region50: #{tpu_custom_call.1} parent=1 // pred_check
      _
    $region51: #{tpu_custom_call.1} parent=1 // pred_check_branch
      %117 = sbr.rel (0) target = $region53
    $region52: #{tpu_custom_call.1} parent=1 // pred_region
      %119 = vsyncadd [#allocation6], 0
      %s121 = sshll.u32 %s12, 4
      %s122 = int_to_ptr.vmem [resolvable:$true] %s121
      %124 = dma.vmem_to_smem %s122, 16, [#allocation15], [#allocation6]
    $region53: #{tpu_custom_call.1} parent=1 // pred_fallthru
      _
    // Predicated region
    $region54: #{tpu_custom_call.1} parent=1 // pred_check
      _
    $region55: #{tpu_custom_call.1} parent=1 // pred_check_branch
      %126 = sbr.rel (0) target = $region57
    $region56: #{tpu_custom_call.1} parent=1 // pred_region
      _
    $region57: #{tpu_custom_call.1} parent=1 // pred_fallthru
      _
    // Predicated region
    $region58: #{tpu_custom_call.1} parent=1 // pred_check
      _
    $region59: #{tpu_custom_call.1} parent=1 // pred_check_branch
      %128 = sbr.rel (0) target = $region61
    $region60: #{tpu_custom_call.1} parent=1 // pred_region
      %130 = dma.done [#allocation4], 256
    $region61: #{tpu_custom_call.1} parent=1 // pred_fallthru
      _
    // Predicated region
    $region62: #{tpu_custom_call.1} parent=1 // pred_check
      _
    $region63: #{tpu_custom_call.1} parent=1 // pred_check_branch
      %132 = sbr.rel (0) target = $region65
    $region64: #{tpu_custom_call.1} parent=1 // pred_region
      %134 = dma.done [#allocation8], 512
    $region65: #{tpu_custom_call.1} parent=1 // pred_fallthru
      _
    // Predicated region
    $region66: #{tpu_custom_call.1} parent=1 // pred_check
      _
    $region67: #{tpu_custom_call.1} parent=1 // pred_check_branch
      %136 = sbr.rel (0) target = $region69
    $region68: #{tpu_custom_call.1} parent=1 // pred_region
      %138 = dma.done [#allocation8], 1024
    $region69: #{tpu_custom_call.1} parent=1 // pred_fallthru
      _
    // Predicated region
    $region70: #{tpu_custom_call.1} parent=1 // pred_check
      _
    $region71: #{tpu_custom_call.1} parent=1 // pred_check_branch
      %140 = sbr.rel (0) target = $region73
    $region72: #{tpu_custom_call.1} parent=1 // pred_region
      %142 = dma.done [#allocation11], 2048
    $region73: #{tpu_custom_call.1} parent=1 // pred_fallthru
      _
    // Predicated region
    $region74: #{tpu_custom_call.1} parent=1 // pred_check
      _
    $region75: #{tpu_custom_call.1} parent=1 // pred_check_branch
      %144 = sbr.rel (0) target = $region77
    $region76: #{tpu_custom_call.1} parent=1 // pred_region
      %146 = dma.done [#allocation11], 2048
    $region77: #{tpu_custom_call.1} parent=1 // pred_fallthru
      _
    // Predicated region
    $region78: #{tpu_custom_call.1} parent=1 // pred_check
      _
    $region79: #{tpu_custom_call.1} parent=1 // pred_check_branch
      %148 = sbr.rel (0) target = $region81
    $region80: #{tpu_custom_call.1} parent=1 // pred_region
      %150 = dma.done [#allocation14], 2048
    $region81: #{tpu_custom_call.1} parent=1 // pred_fallthru
      _
    // Predicated region
    $region82: #{tpu_custom_call.1} parent=1 // pred_check
      _
    $region83: #{tpu_custom_call.1} parent=1 // pred_check_branch
      %152 = sbr.rel (0) target = $region85
    $region84: #{tpu_custom_call.1} parent=1 // pred_region
      %154 = dma.done [#allocation6], 16
    $region85: #{tpu_custom_call.1} parent=1 // pred_fallthru
      _
    %155 = sfence
    %v156 = vld [vmem:[#allocation3] sm:$0xff]
    %v157 = vld [vmem:[#allocation3 + $0x8] sm:$0xff]
    %v158 = vld [vmem:[#allocation7] sm:$0xff]
    %v159 = vld [vmem:[#allocation7 + $0x8] sm:$0xff]
    %v160 = vld [vmem:[#allocation7 + $0x10] sm:$0xff]
    %v161 = vld [vmem:[#allocation7 + $0x18] sm:$0xff]
    %v162 = vld [vmem:[%s2] sm:$0x1]
    %v164 = vperm.slane %v162, 0
    %vm166 = vcmask 261120
    %v168 = vsel %vm166, %v156, 0
    %v171 = vsel %vm166, %v157, 0
    %173 = vmatpush.msra.mxu0 0.0
    %174 = vmatpush.msra.mxu0 0.0
    %175 = vmatpush.msra.mxu0 0.0
    %176 = vmatpush.msra.mxu0 0.0
    %177 = vmatpush.msra.mxu0 0.0
    %178 = vmatpush.msra.mxu0 0.0
    %179 = vmatpush.msra.mxu0 0.0
    %180 = vmatpush.msra.mxu0 0.0
    %181 = vmatpush.msra.mxu0 0.0
    %182 = vmatpush.msra.mxu0 0.0
    %183 = vmatpush.msra.mxu0 0.0
    %184 = vmatpush.msra.mxu0 0.0
    %185 = vmatpush.msra.mxu0 %v161
    %186 = vmatpush.msra.mxu0 %v160
    %187 = vmatpush.msra.mxu0 %v159
    %188 = vmatpush.msra.mxu0 %v158
    %189 = vmatmul.f32.gmra.mxu0 %v168
    %v190 = vpop.f32.mrf.mxu0
    %v191 = vadd.f32 %v164, %v190
    %192 = vmatmul.f32.gmra.mxu0 %v171
    %v193 = vpop.f32.mrf.mxu0
    %v194 = vadd.f32 %v164, %v193
    %195 = vdwg.mxu0
    %v196 = vmul.f32 %v191, 0.5
    %v197 = vmul.f32 %v194, 0.5
    %v198 = vmul.f32 %v191, 0.70710677
    %v199 = vmul.f32 %v194, 0.70710677
    %v200 = vmul.f32 %v198, %v198
    %v201 = vmin.f32 16.0, %v200
    %v202 = vmul.f32 %v201, 2.1237322e-06
    %v203 = vadd.f32 %v202, 0.00028619796
    %v204 = vmul.f32 %v201, %v203
    %v205 = vadd.f32 %v204, 0.0036580483
    %v206 = vmul.f32 %v201, %v205
    %v207 = vadd.f32 %v206, 0.05243302
    %v208 = vmul.f32 %v201, %v207
    %v209 = vadd.f32 %v208, 0.18741608
    %v210 = vmul.f32 %v201, %v209
    %v211 = vadd.f32 %v210, 1.1283791
    %v212 = vmul.f32 %v198, %v211
    %v213 = vmul.f32 %v201, 3.8918573e-05
    %v214 = vadd.f32 %v213, 0.001143296
    %v215 = vmul.f32 %v201, %v214
    %v216 = vadd.f32 %v215, 0.014752088
    %v217 = vmul.f32 %v201, %v216
    %v218 = vadd.f32 %v217, 0.112945676
    %v219 = vmul.f32 %v201, %v218
    %v220 = vadd.f32 %v219, 0.4994258
    %v221 = vmul.f32 %v201, %v220
    %v222 = vadd.f32 %v221, 1.0
    %v223 = vrcp.pop %v222
    %v224 = vmul.f32 %v222, %v223
    %v225 = vsub.f32 1.0, %v224
    %v226 = vmul.f32 %v223, %v225
    %v227 = vadd.f32 %v223, %v226
    %vm228 = vweird.f32 %v222
    %vm229 = vweird.f32 %v223
    %vm230 = vmor %vm228, %vm229
    %v231 = vsel %vm230, %v223, %v227
    %v232 = vand.u32 2147483647, %v222
    %vm233 = vcmp.eq.f32.partialorder %v232, 8.507059e+37
    %v234 = vand.u32 %v222, 2147483648
    %v235 = vor.u32 1.1754944e-38, %v234
    %v236 = vsel %vm233, %v235, %v231
    %v237 = vmul.f32 %v212, %v236
    %v238 = vmin.f32 %v237, 1.0
    %v239 = vmax.f32 %v238, -1.0
    %v240 = vmul.f32 %v199, %v199
    %v241 = vmin.f32 16.0, %v240
    %v242 = vmul.f32 %v241, 2.1237322e-06
    %v243 = vadd.f32 %v242, 0.00028619796
    %v244 = vmul.f32 %v241, %v243
    %v245 = vadd.f32 %v244, 0.0036580483
    %v246 = vmul.f32 %v241, %v245
    %v247 = vadd.f32 %v246, 0.05243302
    %v248 = vmul.f32 %v241, %v247
    %v249 = vadd.f32 %v248, 0.18741608
    %v250 = vmul.f32 %v241, %v249
    %v251 = vadd.f32 %v250, 1.1283791
    %v252 = vmul.f32 %v199, %v251
    %v253 = vmul.f32 %v241, 3.8918573e-05
    %v254 = vadd.f32 %v253, 0.001143296
    %v255 = vmul.f32 %v241, %v254
    %v256 = vadd.f32 %v255, 0.014752088
    %v257 = vmul.f32 %v241, %v256
    %v258 = vadd.f32 %v257, 0.112945676
    %v259 = vmul.f32 %v241, %v258
    %v260 = vadd.f32 %v259, 0.4994258
    %v261 = vmul.f32 %v241, %v260
    %v262 = vadd.f32 %v261, 1.0
    %v263 = vrcp.pop %v262
    %v264 = vmul.f32 %v262, %v263
    %v265 = vsub.f32 1.0, %v264
    %v266 = vmul.f32 %v263, %v265
    %v267 = vadd.f32 %v263, %v266
    %vm268 = vweird.f32 %v262
    %vm269 = vweird.f32 %v263
    %vm270 = vmor %vm268, %vm269
    %v271 = vsel %vm270, %v263, %v267
    %v272 = vand.u32 2147483647, %v262
    %vm273 = vcmp.eq.f32.partialorder %v272, 8.507059e+37
    %v274 = vand.u32 %v262, 2147483648
    %v275 = vor.u32 1.1754944e-38, %v274
    %v276 = vsel %vm273, %v275, %v271
    %v277 = vmul.f32 %v252, %v276
    %v278 = vmin.f32 %v277, 1.0
    %v279 = vmax.f32 %v278, -1.0
    %v280 = vadd.f32 %v239, 1.0
    %v281 = vadd.f32 %v279, 1.0
    %v282 = vmul.f32 %v196, %v280
    %v283 = vmul.f32 %v197, %v281
    %v284 = vld [vmem:[#allocation9] sm:$0xff]
    %v285 = vld [vmem:[#allocation9 + $0x8] sm:$0xff]
    %v286 = vld [vmem:[#allocation9 + $0x10] sm:$0xff]
    %v287 = vld [vmem:[#allocation9 + $0x18] sm:$0xff]
    %v288 = vld [vmem:[#allocation9 + $0x20] sm:$0xff]
    %v289 = vld [vmem:[#allocation9 + $0x28] sm:$0xff]
    %v290 = vld [vmem:[#allocation9 + $0x30] sm:$0xff]
    %v291 = vld [vmem:[#allocation9 + $0x38] sm:$0xff]
    %v292 = vld [vmem:[%s4] sm:$0x1]
    %v294 = vperm.slane %v292, 0
    %vm296 = vcmask 523264
    %v298 = vsel %vm296, %v282, 0
    %v301 = vsel %vm296, %v283, 0
    %303 = vmatpush.msra.mxu0 0.0
    %304 = vmatpush.msra.mxu0 0.0
    %305 = vmatpush.msra.mxu0 0.0
    %306 = vmatpush.msra.mxu0 0.0
    %307 = vmatpush.msra.mxu0 0.0
    %308 = vmatpush.msra.mxu0 0.0
    %309 = vmatpush.msra.mxu0 0.0
    %310 = vmatpush.msra.mxu0 0.0
    %311 = vmatpush.msra.mxu0 %v291
    %312 = vmatpush.msra.mxu0 %v290
    %313 = vmatpush.msra.mxu0 %v289
    %314 = vmatpush.msra.mxu0 %v288
    %315 = vmatpush.msra.mxu0 %v287
    %316 = vmatpush.msra.mxu0 %v286
    %317 = vmatpush.msra.mxu0 %v285
    %318 = vmatpush.msra.mxu0 %v284
    %319 = vmatmul.f32.gmra.mxu0 %v298
    %v320 = vpop.f32.mrf.mxu0
    %v321 = vadd.f32 %v294, %v320
    %322 = vmatmul.f32.gmra.mxu0 %v301
    %v323 = vpop.f32.mrf.mxu0
    %v324 = vadd.f32 %v294, %v323
    %325 = vdwg.mxu0
    %v326 = vld [vmem:[#allocation10] sm:$0xff]
    %v327 = vld [vmem:[#allocation10 + $0x8] sm:$0xff]
    %v328 = vld [vmem:[#allocation10 + $0x10] sm:$0xff]
    %v329 = vld [vmem:[#allocation10 + $0x18] sm:$0xff]
    %v330 = vld [vmem:[#allocation10 + $0x20] sm:$0xff]
    %v331 = vld [vmem:[#allocation10 + $0x28] sm:$0xff]
    %v332 = vld [vmem:[#allocation10 + $0x30] sm:$0xff]
    %v333 = vld [vmem:[#allocation10 + $0x38] sm:$0xff]
    %v334 = vld [vmem:[#allocation10 + $0x40] sm:$0xff]
    %v335 = vld [vmem:[#allocation10 + $0x48] sm:$0xff]
    %v336 = vld [vmem:[#allocation10 + $0x50] sm:$0xff]
    %v337 = vld [vmem:[#allocation10 + $0x58] sm:$0xff]
    %v338 = vld [vmem:[#allocation10 + $0x60] sm:$0xff]
    %v339 = vld [vmem:[#allocation10 + $0x68] sm:$0xff]
    %v340 = vld [vmem:[#allocation10 + $0x70] sm:$0xff]
    %v341 = vld [vmem:[#allocation10 + $0x78] sm:$0xff]
    %v342 = vld [vmem:[%s6] sm:$0x1]
    %v344 = vperm.slane %v342, 0
    %346 = vmatpush.msra.mxu0 %v341
    %347 = vmatpush.msra.mxu0 %v340
    %348 = vmatpush.msra.mxu0 %v339
    %349 = vmatpush.msra.mxu0 %v338
    %350 = vmatpush.msra.mxu0 %v337
    %351 = vmatpush.msra.mxu0 %v336
    %352 = vmatpush.msra.mxu0 %v335
    %353 = vmatpush.msra.mxu0 %v334
    %354 = vmatpush.msra.mxu0 %v333
    %355 = vmatpush.msra.mxu0 %v332
    %356 = vmatpush.msra.mxu0 %v331
    %357 = vmatpush.msra.mxu0 %v330
    %358 = vmatpush.msra.mxu0 %v329
    %359 = vmatpush.msra.mxu0 %v328
    %360 = vmatpush.msra.mxu0 %v327
    %361 = vmatpush.msra.mxu0 %v326
    %362 = vmatmul.f32.gmra.mxu0 %v321
    %v363 = vpop.f32.mrf.mxu0
    %v364 = vadd.f32 %v344, %v363
    %365 = vmatmul.f32.gmra.mxu0 %v324
    %v366 = vpop.f32.mrf.mxu0
    %v367 = vadd.f32 %v344, %v366
    %368 = vdwg.mxu0
    %v369 = vld [vmem:[#allocation12] sm:$0xff]
    %v370 = vld [vmem:[#allocation12 + $0x8] sm:$0xff]
    %v371 = vld [vmem:[#allocation12 + $0x10] sm:$0xff]
    %v372 = vld [vmem:[#allocation12 + $0x18] sm:$0xff]
    %v373 = vld [vmem:[#allocation12 + $0x20] sm:$0xff]
    %v374 = vld [vmem:[#allocation12 + $0x28] sm:$0xff]
    %v375 = vld [vmem:[#allocation12 + $0x30] sm:$0xff]
    %v376 = vld [vmem:[#allocation12 + $0x38] sm:$0xff]
    %v377 = vld [vmem:[#allocation12 + $0x40] sm:$0xff]
    %v378 = vld [vmem:[#allocation12 + $0x48] sm:$0xff]
    %v379 = vld [vmem:[#allocation12 + $0x50] sm:$0xff]
    %v380 = vld [vmem:[#allocation12 + $0x58] sm:$0xff]
    %v381 = vld [vmem:[#allocation12 + $0x60] sm:$0xff]
    %v382 = vld [vmem:[#allocation12 + $0x68] sm:$0xff]
    %v383 = vld [vmem:[#allocation12 + $0x70] sm:$0xff]
    %v384 = vld [vmem:[#allocation12 + $0x78] sm:$0xff]
    %v385 = vld [vmem:[%s8] sm:$0x1]
    %v387 = vperm.slane %v385, 0
    %389 = vmatpush.msra.mxu0 %v384
    %390 = vmatpush.msra.mxu0 %v383
    %391 = vmatpush.msra.mxu0 %v382
    %392 = vmatpush.msra.mxu0 %v381
    %393 = vmatpush.msra.mxu0 %v380
    %394 = vmatpush.msra.mxu0 %v379
    %395 = vmatpush.msra.mxu0 %v378
    %396 = vmatpush.msra.mxu0 %v377
    %397 = vmatpush.msra.mxu0 %v376
    %398 = vmatpush.msra.mxu0 %v375
    %399 = vmatpush.msra.mxu0 %v374
    %400 = vmatpush.msra.mxu0 %v373
    %401 = vmatpush.msra.mxu0 %v372
    %402 = vmatpush.msra.mxu0 %v371
    %403 = vmatpush.msra.mxu0 %v370
    %404 = vmatpush.msra.mxu0 %v369
    %405 = vmatmul.f32.gmra.mxu0 %v321
    %v406 = vpop.f32.mrf.mxu0
    %v407 = vadd.f32 %v387, %v406
    %408 = vmatmul.f32.gmra.mxu0 %v324
    %v409 = vpop.f32.mrf.mxu0
    %v410 = vadd.f32 %v387, %v409
    %411 = vdwg.mxu0
    %v412 = vmul.f32 %v364, %v364
    %v413 = vmul.f32 %v367, %v367
    %414 = vadd.xlane.f32.xlu0 %v412
    %v415 = vpop.xlane.xlu0 %414
    %416 = vadd.xlane.f32.xlu0 %v413
    %v417 = vpop.xlane.xlu0 %416
    %v418 = vrsqrt.pop %v415
    %v419 = vmul.f32 %v418, %v415
    %v420 = vmul.f32 %v419, %v418
    %v421 = vmul.f32 0.5, %v420
    %v422 = vsub.f32 1.5, %v421
    %v423 = vmul.f32 %v418, %v422
    %v424 = vmul.f32 %v415, %v423
    %vm425 = vcmp.eq.f32.partialorder %v415, inf
    %v426 = vsel %vm425, %v415, %v424
    %vm427 = vcmp.eq.f32.partialorder %v415, 0.0
    %v428 = vand.u32 %v415, 2147483648
    %v429 = vsel %vm427, %v428, %v426
    %v430 = vrsqrt.pop %v417
    %v431 = vmul.f32 %v430, %v417
    %v432 = vmul.f32 %v431, %v430
    %v433 = vmul.f32 0.5, %v432
    %v434 = vsub.f32 1.5, %v433
    %v435 = vmul.f32 %v430, %v434
    %v436 = vmul.f32 %v417, %v435
    %vm437 = vcmp.eq.f32.partialorder %v417, inf
    %v438 = vsel %vm437, %v417, %v436
    %vm439 = vcmp.eq.f32.partialorder %v417, 0.0
    %v440 = vand.u32 %v417, 2147483648
    %v441 = vsel %vm439, %v440, %v438
    %v442 = vmax.f32 %v429, 1e-12
    %v443 = vmax.f32 %v441, 1e-12
    %v444 = vrcp.pop %v442
    %v445 = vmul.f32 %v442, %v444
    %v446 = vsub.f32 1.0, %v445
    %v447 = vmul.f32 %v444, %v446
    %v448 = vadd.f32 %v444, %v447
    %vm449 = vweird.f32 %v442
    %vm450 = vweird.f32 %v444
    %vm451 = vmor %vm449, %vm450
    %v452 = vsel %vm451, %v444, %v448
    %v453 = vand.u32 2147483647, %v442
    %vm454 = vcmp.eq.f32.partialorder %v453, 8.507059e+37
    %v455 = vand.u32 %v442, 2147483648
    %v456 = vor.u32 1.1754944e-38, %v455
    %v457 = vsel %vm454, %v456, %v452
    %v458 = vmul.f32 %v364, %v457
    %v459 = vrcp.pop %v443
    %v460 = vmul.f32 %v443, %v459
    %v461 = vsub.f32 1.0, %v460
    %v462 = vmul.f32 %v459, %v461
    %v463 = vadd.f32 %v459, %v462
    %vm464 = vweird.f32 %v443
    %vm465 = vweird.f32 %v459
    %vm466 = vmor %vm464, %vm465
    %v467 = vsel %vm466, %v459, %v463
    %v468 = vand.u32 2147483647, %v443
    %vm469 = vcmp.eq.f32.partialorder %v468, 8.507059e+37
    %v470 = vand.u32 %v443, 2147483648
    %v471 = vor.u32 1.1754944e-38, %v470
    %v472 = vsel %vm469, %v471, %v467
    %v473 = vmul.f32 %v367, %v472
    %v474 = vmul.f32 %v407, %v407
    %v475 = vmul.f32 %v410, %v410
    %476 = vadd.xlane.f32.xlu0 %v474
    %v477 = vpop.xlane.xlu0 %476
    %478 = vadd.xlane.f32.xlu0 %v475
    %v479 = vpop.xlane.xlu0 %478
    %v480 = vrsqrt.pop %v477
    %v481 = vmul.f32 %v480, %v477
    %v482 = vmul.f32 %v481, %v480
    %v483 = vmul.f32 0.5, %v482
    %v484 = vsub.f32 1.5, %v483
    %v485 = vmul.f32 %v480, %v484
    %v486 = vmul.f32 %v477, %v485
    %vm487 = vcmp.eq.f32.partialorder %v477, inf
    %v488 = vsel %vm487, %v477, %v486
    %vm489 = vcmp.eq.f32.partialorder %v477, 0.0
    %v490 = vand.u32 %v477, 2147483648
    %v491 = vsel %vm489, %v490, %v488
    %v492 = vrsqrt.pop %v479
    %v493 = vmul.f32 %v492, %v479
    %v494 = vmul.f32 %v493, %v492
    %v495 = vmul.f32 0.5, %v494
    %v496 = vsub.f32 1.5, %v495
    %v497 = vmul.f32 %v492, %v496
    %v498 = vmul.f32 %v479, %v497
    %vm499 = vcmp.eq.f32.partialorder %v479, inf
    %v500 = vsel %vm499, %v479, %v498
    %vm501 = vcmp.eq.f32.partialorder %v479, 0.0
    %v502 = vand.u32 %v479, 2147483648
    %v503 = vsel %vm501, %v502, %v500
    %v504 = vmax.f32 %v491, 1e-12
    %v505 = vmax.f32 %v503, 1e-12
    %v506 = vrcp.pop %v504
    %v507 = vmul.f32 %v504, %v506
    %v508 = vsub.f32 1.0, %v507
    %v509 = vmul.f32 %v506, %v508
    %v510 = vadd.f32 %v506, %v509
    %vm511 = vweird.f32 %v504
    %vm512 = vweird.f32 %v506
    %vm513 = vmor %vm511, %vm512
    %v514 = vsel %vm513, %v506, %v510
    %v515 = vand.u32 2147483647, %v504
    %vm516 = vcmp.eq.f32.partialorder %v515, 8.507059e+37
    %v517 = vand.u32 %v504, 2147483648
    %v518 = vor.u32 1.1754944e-38, %v517
    %v519 = vsel %vm516, %v518, %v514
    %v520 = vmul.f32 %v407, %v519
    %v521 = vrcp.pop %v505
    %v522 = vmul.f32 %v505, %v521
    %v523 = vsub.f32 1.0, %v522
    %v524 = vmul.f32 %v521, %v523
    %v525 = vadd.f32 %v521, %v524
    %vm526 = vweird.f32 %v505
    %vm527 = vweird.f32 %v521
    %vm528 = vmor %vm526, %vm527
    %v529 = vsel %vm528, %v521, %v525
    %v530 = vand.u32 2147483647, %v505
    %vm531 = vcmp.eq.f32.partialorder %v530, 8.507059e+37
    %v532 = vand.u32 %v505, 2147483648
    %v533 = vor.u32 1.1754944e-38, %v532
    %v534 = vsel %vm531, %v533, %v529
    %v535 = vmul.f32 %v410, %v534
    %v536 = vrot.slane %v520, 4
    %v537 = vadd.f32 %v520, %v536
    %v538 = vrot.slane %v537, 2
    %v539 = vadd.f32 %v537, %v538
    %v540 = vrot.slane %v539, 1
    %v541 = vadd.f32 %v539, %v540
    %v542 = vrot.slane %v535, 4
    %v543 = vadd.f32 %v535, %v542
    %v544 = vrot.slane %v543, 2
    %v545 = vadd.f32 %v543, %v544
    %v546 = vrot.slane %v545, 1
    %v547 = vadd.f32 %v545, %v546
    %v548 = vrcp.pop 8.0
    %v549 = vmul.f32 8.0, %v548
    %v550 = vsub.f32 1.0, %v549
    %v551 = vmul.f32 %v548, %v550
    %v552 = vadd.f32 %v548, %v551
    %vm553 = vweird.f32 %v548
    %v554 = vsel %vm553, %v548, %v552
    %v555 = vmul.f32 %v541, %v554
    %v556 = vmul.f32 %v547, %v554
    %v557 = vmul.f32 %v458, %v555
    %v558 = vmul.f32 %v473, %v556
    %559 = vadd.xlane.f32.xlu0 %v557
    %v560 = vpop.xlane.xlu0 %559
    %561 = vadd.xlane.f32.xlu0 %v558
    %v562 = vpop.xlane.xlu0 %561
    %v563 = vld [vmem:[#allocation13] sm:$0xff]
    %v564 = vld [vmem:[#allocation13 + $0x8] sm:$0xff]
    %v565 = vld [vmem:[#allocation13 + $0x10] sm:$0xff]
    %v566 = vld [vmem:[#allocation13 + $0x18] sm:$0xff]
    %v567 = vld [vmem:[#allocation13 + $0x20] sm:$0xff]
    %v568 = vld [vmem:[#allocation13 + $0x28] sm:$0xff]
    %v569 = vld [vmem:[#allocation13 + $0x30] sm:$0xff]
    %v570 = vld [vmem:[#allocation13 + $0x38] sm:$0xff]
    %v571 = vld [vmem:[#allocation13 + $0x40] sm:$0xff]
    %v572 = vld [vmem:[#allocation13 + $0x48] sm:$0xff]
    %v573 = vld [vmem:[#allocation13 + $0x50] sm:$0xff]
    %v574 = vld [vmem:[#allocation13 + $0x58] sm:$0xff]
    %v575 = vld [vmem:[#allocation13 + $0x60] sm:$0xff]
    %v576 = vld [vmem:[#allocation13 + $0x68] sm:$0xff]
    %v577 = vld [vmem:[#allocation13 + $0x70] sm:$0xff]
    %v578 = vld [vmem:[#allocation13 + $0x78] sm:$0xff]
    %v579 = vld [vmem:[%s10] sm:$0x1]
    %v581 = vperm.slane %v579, 0
    %583 = vmatpush.msra.mxu0 %v578
    %584 = vmatpush.msra.mxu0 %v577
    %585 = vmatpush.msra.mxu0 %v576
    %586 = vmatpush.msra.mxu0 %v575
    %587 = vmatpush.msra.mxu0 %v574
    %588 = vmatpush.msra.mxu0 %v573
    %589 = vmatpush.msra.mxu0 %v572
    %590 = vmatpush.msra.mxu0 %v571
    %591 = vmatpush.msra.mxu0 %v570
    %592 = vmatpush.msra.mxu0 %v569
    %593 = vmatpush.msra.mxu0 %v568
    %594 = vmatpush.msra.mxu0 %v567
    %595 = vmatpush.msra.mxu0 %v566
    %596 = vmatpush.msra.mxu0 %v565
    %597 = vmatpush.msra.mxu0 %v564
    %598 = vmatpush.msra.mxu0 %v563
    %599 = vmatmul.f32.gmra.mxu0 %v321
    %v600 = vpop.f32.mrf.mxu0
    %v601 = vadd.f32 %v581, %v600
    %602 = vmatmul.f32.gmra.mxu0 %v324
    %v603 = vpop.f32.mrf.mxu0
    %v604 = vadd.f32 %v581, %v603
    %605 = vdwg.mxu0
    %v606 = vmax.f32 %v601, 0.0
    %v607 = vmax.f32 %v604, 0.0
    %v608 = vld [vmem:[%s11] sm:$0x1]
    %v610 = vperm.slane %v608, 0
    %v612 = vmul.f32 %v606, %v610
    %v613 = vmul.f32 %v607, %v610
    %614 = vadd.xlane.f32.xlu0 %v612
    %v615 = vpop.xlane.xlu0 %614
    %616 = vadd.xlane.f32.xlu0 %v613
    %v617 = vpop.xlane.xlu0 %616
    %s618 = sld [smem:[#allocation2]]
    %v619 = vstv %s618
    %v620 = vadd.f32 %v615, %v619
    %v621 = vadd.f32 %v617, %v619
    %s622 = sld [smem:[#allocation15]]
    %v623 = vstv %s622
    %v624 = vmul.f32 %v623, %v560
    %v625 = vmul.f32 %v623, %v562
    %s626 = sld [smem:[#allocation15 + $0x1]]
    %v627 = vstv %s626
    %v628 = vmul.f32 %v627, %v620
    %v629 = vmul.f32 %v627, %v621
    %v630 = vadd.f32 %v624, %v628
    %v631 = vadd.f32 %v625, %v629
    %v634 = vlaneseq
    %v635 = vand.u32 %v634, 127
    %v636 = vperm.slane %v630, %v635
    %v637 = vperm.slane %v631, %v635
    %vm638 = vcmask 1041409
    %v639 = vsel %vm638, %v637, %v636
    %vm641 = vcmask 58368
    %v642 = vsel %vm641, %v639, -inf
    %643 = vmax.xlane.f32.xlu0 %v642
    %v644 = vpop.xlane.xlu0 %643
    %v646 = vperm.slane %v644, 0
    %v647 = vperm.slane %v644, 1
    %v650 = vsub.f32 %v630, %v646
    %v651 = vsub.f32 %v631, %v647
    %v652 = vmul.f32 %v650, 1.442695
    %v653 = vpow.pop %v652
    %v654 = vmul.f32 %v651, 1.442695
    %v655 = vpow.pop %v654
    %658 = vset.pattern.permute.xlu0 0
    %659 = vperm.xlu0 %658, %v653
    %v660 = vpop.permute.xlu0 %659
    %661 = vset.pattern.permute.xlu0 0
    %662 = vperm.xlu0 %661, %v655
    %v663 = vpop.permute.xlu0 %662
    %v664 = vperm.slane %v660, %v635
    %v665 = vperm.slane %v663, %v635
    %v666 = vsel %vm638, %v665, %v664
    %v668 = vsel %vm641, %v666, 0.0
    %669 = vadd.xlane.f32.xlu0 %v668
    %v670 = vpop.xlane.xlu0 %669
    %v671 = vrcp.pop %v670
    %v672 = vmul.f32 %v670, %v671
    %v673 = vsub.f32 1.0, %v672
    %v674 = vmul.f32 %v671, %v673
    %v675 = vadd.f32 %v671, %v674
    %vm676 = vweird.f32 %v670
    %vm677 = vweird.f32 %v671
    %vm678 = vmor %vm676, %vm677
    %v679 = vsel %vm678, %v671, %v675
    %v680 = vand.u32 2147483647, %v670
    %vm681 = vcmp.eq.f32.partialorder %v680, 8.507059e+37
    %v682 = vand.u32 %v670, 2147483648
    %v683 = vor.u32 1.1754944e-38, %v682
    %v684 = vsel %vm681, %v683, %v679
    %v686 = vperm.slane %v684, 0
    %v687 = vperm.slane %v684, 1
    %v690 = vmul.f32 %v653, %v686
    %v691 = vmul.f32 %v655, %v687
    %693 = vset.pattern.permute.xlu0 0
    %694 = vperm.xlu0 %693, %v690
    %v695 = vpop.permute.xlu0 %694
    %698 = vset.pattern.permute.xlu0 0
    %699 = vperm.xlu0 %698, %v691
    %v700 = vpop.permute.xlu0 %699
    %v702 = vmul.f32 %v695, %v321
    %v703 = vmul.f32 %v700, %v324
    %v704 = vrot.slane %v702, 4
    %v705 = vadd.f32 %v702, %v704
    %v706 = vrot.slane %v705, 2
    %v707 = vadd.f32 %v705, %v706
    %v708 = vrot.slane %v707, 1
    %v709 = vadd.f32 %v707, %v708
    %v710 = vrot.slane %v703, 4
    %v711 = vadd.f32 %v703, %v710
    %v712 = vrot.slane %v711, 2
    %v713 = vadd.f32 %v711, %v712
    %v714 = vrot.slane %v713, 1
    %v715 = vadd.f32 %v713, %v714
    %v718 = vsel %vm638, %v715, %v709
    %720 = vst [vmem:[#allocation16] sm:$0x3] %v718
    // Predicated region
    $region86: #{tpu_custom_call.1} parent=1 // pred_check
      _
    $region87: #{tpu_custom_call.1} parent=1 // pred_check_branch
      %722 = sbr.rel (0) target = $region89
    $region88: #{tpu_custom_call.1} parent=1 // pred_region
      %724 = vsyncadd [#allocation5], 0
      %s726 = sshll.u32 [#allocation16], 4
      %s727 = int_to_ptr.vmem [resolvable:$true] %s726
      %s728 = sshll.u32 %s14, 4
      %s729 = int_to_ptr.hbm [resolvable:$true] %s728
      %731 = dma.vmem_to_hbm [thread:$0]  %s727, 32, %s729, [#allocation5]
    $region89: #{tpu_custom_call.1} parent=1 // pred_fallthru
      _
    // Predicated region
    $region90: #{tpu_custom_call.1} parent=1 // pred_check
      _
    $region91: #{tpu_custom_call.1} parent=1 // pred_check_branch
      %733 = sbr.rel (0) target = $region93
    $region92: #{tpu_custom_call.1} parent=1 // pred_region
      %735 = dma.done [#allocation5], 32
    $region93: #{tpu_custom_call.1} parent=1 // pred_fallthru
      _
    %736 = vsyncpa [#allocation4], 1
    %737 = vsyncpa [#allocation8], 1
    %738 = vsyncpa [#allocation11], 1
    %739 = vsyncpa [#allocation14], 1
    %740 = vsyncpa [#allocation5], 1
    %741 = vsyncpa [#allocation6], 1

</llo_original>
